<compile_context>
chip_gen: v6e
topology: v6e:2x2x1
jax: 0.10.0
libtpu: 0.0.40
codegen_flags: <defaults>
</compile_context>

<pallas_src>
import functools

import jax
import jax.numpy as jnp
from jax import lax
from jax.experimental import pallas as pl
from jax.experimental.pallas import tpu as pltpu


def _round_up(x, m):
    return (x + m - 1) // m * m


def _composite_loss_kernel(slab_ref, out_ref, acc_ref, *,
                           loss_lambda, alpha, beta, n_points, n_real, use_roll):
    """slab_ref block: (P, TB, Npad) with planes
       [pred_x, pred_y, tgt_x, tgt_y, vis] (+ [prev_x, prev_y, next_x, next_y]
       when use_roll=False).  acc_ref: SMEM f32[3] running sums."""
    step = pl.program_id(0)

    @pl.when(step == 0)
    def _():
        acc_ref[0] = 0.0   # sum(ani)
        acc_ref[1] = 0.0   # sum(vis * per-point mse)
        acc_ref[2] = 0.0   # sum(vis)

    ox = slab_ref[0].astype(jnp.float32)
    oy = slab_ref[1].astype(jnp.float32)
    tx = slab_ref[2].astype(jnp.float32)
    ty = slab_ref[3].astype(jnp.float32)
    vis = slab_ref[4].astype(jnp.float32)

    ex = ox - tx
    ey = oy - ty

    if use_roll:
        npad = tx.shape[-1]
        lane = lax.broadcasted_iota(jnp.int32, tx.shape, 1)
        # Interior landmarks: d[i] = +-(lmk[i+1] - lmk[i-1]).  The per-lane sign
        # is irrelevant because the loss only uses squared projections, so the
        # result does not depend on the roll direction.  Rolls run on the XLU.
        dx_i = pltpu.roll(tx, npad - 1, 1) - pltpu.roll(tx, 1, 1)
        dy_i = pltpu.roll(ty, npad - 1, 1) - pltpu.roll(ty, 1, 1)
        # Clipped endpoints (prev(0)=0, next(N-1)=N-1) fixed explicitly so they
        # are exact regardless of roll wrap-around / zero padding beyond N.
        i1 = min(1, n_real - 1)
        i2 = max(n_real - 2, 0)
        d0x = tx[:, i1:i1 + 1] - tx[:, 0:1]
        d0y = ty[:, i1:i1 + 1] - ty[:, 0:1]
        dLx = tx[:, n_real - 1:n_real] - tx[:, i2:i2 + 1]
        dLy = ty[:, n_real - 1:n_real] - ty[:, i2:i2 + 1]
        dx = jnp.where(lane == 0, d0x, jnp.where(lane == n_real - 1, dLx, dx_i))
        dy = jnp.where(lane == 0, d0y, jnp.where(lane == n_real - 1, dLy, dy_i))
    else:
        px = slab_ref[5].astype(jnp.float32)
        py = slab_ref[6].astype(jnp.float32)
        nx = slab_ref[7].astype(jnp.float32)
        ny = slab_ref[8].astype(jnp.float32)
        dx = nx - px
        dy = ny - py

    inv_norm = lax.rsqrt(dx * dx + dy * dy + 1e-6)
    t_x = dx * inv_norm
    t_y = dy * inv_norm
    e_t = ex * t_x + ey * t_y          # tangential error component
    e_n = ey * t_x - ex * t_y          # normal error component  (n = (-t_y, t_x))
    ani = loss_lambda * e_n * e_n + e_t * e_t
    per_pt_mse = 0.5 * (ex * ex + ey * ey)   # mean over the 2 coords

    acc_ref[0] += jnp.sum(ani)
    acc_ref[1] += jnp.sum(vis * per_pt_mse)
    acc_ref[2] += jnp.sum(vis)

    @pl.when(step == pl.num_programs(0) - 1)
    def _():
        loss_ani = acc_ref[0] * (1.0 / n_points)        # trace-time constant
        loss_vis = acc_ref[1] / (acc_ref[2] + 1e-6)     # once-per-call scalar divide
        out_ref[0, 0] = alpha * loss_ani + beta * loss_vis


def _edge_neighbors(edge_info, num_points):
    """edge_info: iterable of landmark-index chains (facial contours)."""
    prev_idx = list(range(num_points))
    next_idx = list(range(num_points))
    for chain in edge_info:
        chain = list(chain)
        for k, p in enumerate(chain):
            prev_idx[p] = chain[max(k - 1, 0)]
            next_idx[p] = chain[min(k + 1, len(chain) - 1)]
    return jnp.array(prev_idx, jnp.int32), jnp.array(next_idx, jnp.int32)


def composite_coord_loss(output, target, heatmap=None, landmarks=None,
                         visibility=None, *, loss_lambda=2.0, edge_info=None,
                         alpha=1.0, beta=0.1, batch_tile=None,
                         vmem_budget_bytes=6 * 1024 * 1024):
    """output, target: (B, N, 2) landmark coords.  Returns scalar f32 loss."""
    B, N, _ = output.shape

    # bf16 inputs are streamed as bf16 and upcast inside the kernel; anything
    # else is streamed as f32.
    coord_dt = jnp.promote_types(output.dtype, target.dtype)
    slab_dt = jnp.bfloat16 if coord_dt == jnp.bfloat16 else jnp.float32

    output = output.astype(slab_dt)
    target = target.astype(slab_dt)
    if visibility is None:
        visibility = jnp.ones((B, N), slab_dt)
    else:
        visibility = visibility.astype(slab_dt)

    # TODO(synk): heatmap-based per-point weighting inside AnisotropicDirectionLoss
    # is not reproduced (upstream source not provided); heatmap is ignored.
    del heatmap

    # Fast path: synthesize neighbours in-kernel with rolls (no extra HBM planes).
    # Fallback (custom edge_info / landmarks): gather neighbour planes in the
    # wrapper (data-dependent indexing stays in plain JAX glue).
    use_roll = (edge_info is None) and (landmarks is None)

    planes = [output[..., 0], output[..., 1],
              target[..., 0], target[..., 1], visibility]
    if not use_roll:
        lmk = (target if landmarks is None else landmarks).astype(slab_dt)
        if edge_info is None:
            idx = jnp.arange(N)
            prev_idx = jnp.clip(idx - 1, 0, N - 1)
            next_idx = jnp.clip(idx + 1, 0, N - 1)
        else:
            prev_idx, next_idx = _edge_neighbors(edge_info, N)
        planes += [lmk[:, prev_idx, 0], lmk[:, prev_idx, 1],
                   lmk[:, next_idx, 0], lmk[:, next_idx, 1]]
    P = len(planes)

    slab = jnp.stack(planes, axis=0)                     # (P, B, N)

    # Lane-dense landmark axis + sublane-aligned, VMEM-budgeted batch tiles.
    n_pad = _round_up(N, 128)
    itemsize = jnp.dtype(slab_dt).itemsize
    bytes_per_row = P * n_pad * itemsize
    if batch_tile is None:
        # double-buffered input tile stays well inside v5e's 16 MiB scoped default
        # (and v7x's 64 MiB physical VMEM); raise vmem_budget_bytes on v6e if desired.
        tb = max(8, (vmem_budget_bytes // bytes_per_row) // 8 * 8)
    else:
        tb = _round_up(int(batch_tile), 8)
    tb = min(tb, _round_up(B, 8))
    b_pad = _round_up(B, tb)

    slab = jnp.pad(slab, ((0, 0), (0, b_pad - B), (0, n_pad - N)))

    kernel = functools.partial(
        _composite_loss_kernel,
        loss_lambda=float(loss_lambda),
        alpha=float(alpha),
        beta=float(beta),
        n_points=float(B * N),     # true count; padding contributes exact zeros
        n_real=int(N),
        use_roll=use_roll,
    )

    out = pl.pallas_call(
        kernel,
        out_shape=jax.ShapeDtypeStruct((1, 1), jnp.float32),
        grid_spec=pltpu.PrefetchScalarGridSpec(
            num_scalar_prefetch=0,
            grid=(b_pad // tb,),
            in_specs=[pl.BlockSpec((P, tb, n_pad), lambda i: (0, i, 0))],
            out_specs=pl.BlockSpec(memory_space=pltpu.MemorySpace.SMEM),
            scratch_shapes=[pltpu.SMEM((3,), jnp.float32)],
        ),
        compiler_params=pltpu.CompilerParams(
            dimension_semantics=("arbitrary",)),   # grid accumulates into scratch
    )(slab)
    return out[0, 0]


def _reference(output, target, visibility, loss_lambda, alpha, beta,
               prev_idx=None, next_idx=None, landmarks=None):
    B, N, _ = output.shape
    output = output.astype(jnp.float32)
    target = target.astype(jnp.float32)
    lmk = target if landmarks is None else landmarks.astype(jnp.float32)
    err = output - target
    if prev_idx is None:
        idx = jnp.arange(N)
        prev_idx = jnp.clip(idx - 1, 0, N - 1)
        next_idx = jnp.clip(idx + 1, 0, N - 1)
    d = lmk[:, next_idx] - lmk[:, prev_idx]
    inv = lax.rsqrt(jnp.sum(d * d, -1) + 1e-6)
    t = d * inv[..., None]
    n = jnp.stack([-t[..., 1], t[..., 0]], -1)
    e_t = jnp.sum(err * t, -1)
    e_n = jnp.sum(err * n, -1)
    loss_ani = jnp.mean(loss_lambda * e_n ** 2 + e_t ** 2)
    per_pt = jnp.mean(err ** 2, -1)
    if visibility is None:
        visibility = jnp.ones((B, N), jnp.float32)
    loss_vis = jnp.sum(visibility * per_pt) / (jnp.sum(visibility) + 1e-6)
    return alpha * loss_ani + beta * loss_vis


if __name__ == "__main__":
    key = jax.random.PRNGKey(0)
    k1, k2, k3, k4, k5, k6 = jax.random.split(key, 6)

    # --- small smoke test (single-tile grid, roll path) ---------------------
    B, N = 2, 16
    output = jax.random.normal(k1, (B, N, 2), jnp.float32)
    target = jax.random.normal(k2, (B, N, 2), jnp.float32)
    vis = (jax.random.uniform(k3, (B, N)) > 0.3).astype(jnp.float32)

    loss = composite_coord_loss(output, target, visibility=vis,
                                loss_lambda=2.0, alpha=1.0, beta=0.1)
    loss = jax.block_until_ready(loss)
    ref = _reference(output, target, vis, 2.0, 1.0, 0.1)
    assert jnp.allclose(loss, ref, rtol=1e-5, atol=1e-5), (loss, ref)

    # --- multi-step grid + lane padding (68 landmarks, batch tiled) ---------
    B2, N2 = 20, 68
    out2 = jax.random.normal(k4, (B2, N2, 2), jnp.float32)
    tgt2 = jax.random.normal(k5, (B2, N2, 2), jnp.float32)
    vis2 = (jax.random.uniform(k6, (B2, N2)) > 0.5).astype(jnp.float32)
    loss2 = composite_coord_loss(out2, tgt2, visibility=vis2,
                                 loss_lambda=2.0, alpha=1.0, beta=0.1,
                                 batch_tile=8)            # forces a 3-step grid
    loss2 = jax.block_until_ready(loss2)
    ref2 = _reference(out2, tgt2, vis2, 2.0, 1.0, 0.1)
    assert jnp.allclose(loss2, ref2, rtol=1e-5, atol=1e-5), (loss2, ref2)

    # --- edge_info fallback path (explicit neighbour planes) ----------------
    edge_info = [list(range(0, 10)), list(range(10, 16))]
    prev_idx, next_idx = _edge_neighbors(edge_info, N)
    loss3 = composite_coord_loss(output, target, visibility=vis,
                                 loss_lambda=2.0, alpha=1.0, beta=0.1,
                                 edge_info=edge_info)
    loss3 = jax.block_until_ready(loss3)
    ref3 = _reference(output, target, vis, 2.0, 1.0, 0.1,
                      prev_idx=prev_idx, next_idx=next_idx)
    assert jnp.allclose(loss3, ref3, rtol=1e-5, atol=1e-5), (loss3, ref3)

    print("KERNEL_OK")
</pallas_src>

<mosaic_0001>
module attributes {stable_mosaic.version = 11 : i64} {
  func.func @_composite_loss_kernel(%arg0: i32, %arg1: memref<5x8x128xf32, #tpu.memory_space<vmem>>, %arg2: memref<1x1xf32, #tpu.memory_space<smem>>, %arg3: memref<3xf32, #tpu.memory_space<smem>>) attributes {dimension_semantics = [#tpu.dimension_semantics<arbitrary>], iteration_bounds = array<i64: 1>, scalar_prefetch = 0 : i64, scratch_operands = 1 : i64, tpu.core_type = #tpu.core_type<tc>, window_params = [{transform_indices = @transform_0, window_bounds = array<i64: 5, 8, 128>}, {transform_indices = @transform_1, window_bounds = array<i64: 1, 1>}]} {
    %c0_i32 = arith.constant 0 : i32
    %0 = arith.cmpi eq, %arg0, %c0_i32 : i32
    %1 = arith.extui %0 : i1 to i32
    %c0_i32_0 = arith.constant 0 : i32
    %2 = arith.cmpi ne, %1, %c0_i32_0 : i32
    scf.if %2 {
      %cst_29 = arith.constant 0.000000e+00 : f32
      %c0_30 = arith.constant 0 : index
      %103 = memref.load %arg3[%c0_30] : memref<3xf32, #tpu.memory_space<smem>>
      memref.store %cst_29, %arg3[%c0_30] : memref<3xf32, #tpu.memory_space<smem>>
      %cst_31 = arith.constant 0.000000e+00 : f32
      %c1_32 = arith.constant 1 : index
      %104 = memref.load %arg3[%c1_32] : memref<3xf32, #tpu.memory_space<smem>>
      memref.store %cst_31, %arg3[%c1_32] : memref<3xf32, #tpu.memory_space<smem>>
      %cst_33 = arith.constant 0.000000e+00 : f32
      %c2_34 = arith.constant 2 : index
      %105 = memref.load %arg3[%c2_34] : memref<3xf32, #tpu.memory_space<smem>>
      memref.store %cst_33, %arg3[%c2_34] : memref<3xf32, #tpu.memory_space<smem>>
    } else {
    }
    %c0 = arith.constant 0 : index
    %c0_1 = arith.constant 0 : index
    %c0_2 = arith.constant 0 : index
    %3 = vector.load %arg1[%c0, %c0_1, %c0_2] : memref<5x8x128xf32, #tpu.memory_space<vmem>>, vector<1x8x128xf32>
    %4 = vector.shape_cast %3 : vector<1x8x128xf32> to vector<8x128xf32>
    %c1 = arith.constant 1 : index
    %c0_3 = arith.constant 0 : index
    %c0_4 = arith.constant 0 : index
    %5 = vector.load %arg1[%c1, %c0_3, %c0_4] : memref<5x8x128xf32, #tpu.memory_space<vmem>>, vector<1x8x128xf32>
    %6 = vector.shape_cast %5 : vector<1x8x128xf32> to vector<8x128xf32>
    %c2 = arith.constant 2 : index
    %c0_5 = arith.constant 0 : index
    %c0_6 = arith.constant 0 : index
    %7 = vector.load %arg1[%c2, %c0_5, %c0_6] : memref<5x8x128xf32, #tpu.memory_space<vmem>>, vector<1x8x128xf32>
    %8 = vector.shape_cast %7 : vector<1x8x128xf32> to vector<8x128xf32>
    %c3 = arith.constant 3 : index
    %c0_7 = arith.constant 0 : index
    %c0_8 = arith.constant 0 : index
    %9 = vector.load %arg1[%c3, %c0_7, %c0_8] : memref<5x8x128xf32, #tpu.memory_space<vmem>>, vector<1x8x128xf32>
    %10 = vector.shape_cast %9 : vector<1x8x128xf32> to vector<8x128xf32>
    %c4 = arith.constant 4 : index
    %c0_9 = arith.constant 0 : index
    %c0_10 = arith.constant 0 : index
    %11 = vector.load %arg1[%c4, %c0_9, %c0_10] : memref<5x8x128xf32, #tpu.memory_space<vmem>>, vector<1x8x128xf32>
    %12 = vector.shape_cast %11 : vector<1x8x128xf32> to vector<8x128xf32>
    %13 = arith.subf %4, %8 : vector<8x128xf32>
    %14 = arith.subf %6, %10 : vector<8x128xf32>
    %15 = tpu.iota {dimensions = array<i32: 1>} : vector<8x128xi32>
    %c127_i32 = arith.constant 127 : i32
    %16 = tpu.dynamic_rotate %8 by %c127_i32 dim 1 : vector<8x128xf32>, i32 -> vector<8x128xf32>
    %c1_i32 = arith.constant 1 : i32
    %17 = tpu.dynamic_rotate %8 by %c1_i32 dim 1 : vector<8x128xf32>, i32 -> vector<8x128xf32>
    %18 = arith.subf %16, %17 : vector<8x128xf32>
    %c127_i32_11 = arith.constant 127 : i32
    %19 = tpu.dynamic_rotate %10 by %c127_i32_11 dim 1 : vector<8x128xf32>, i32 -> vector<8x128xf32>
    %c1_i32_12 = arith.constant 1 : i32
    %20 = tpu.dynamic_rotate %10 by %c1_i32_12 dim 1 : vector<8x128xf32>, i32 -> vector<8x128xf32>
    %21 = arith.subf %19, %20 : vector<8x128xf32>
    %22 = vector.extract_strided_slice %8 {offsets = [0, 1], sizes = [8, 1], strides = [1, 1]} : vector<8x128xf32> to vector<8x1xf32>
    %23 = vector.extract_strided_slice %8 {offsets = [0, 0], sizes = [8, 1], strides = [1, 1]} : vector<8x128xf32> to vector<8x1xf32>
    %24 = arith.subf %22, %23 : vector<8x1xf32>
    %25 = vector.extract_strided_slice %10 {offsets = [0, 1], sizes = [8, 1], strides = [1, 1]} : vector<8x128xf32> to vector<8x1xf32>
    %26 = vector.extract_strided_slice %10 {offsets = [0, 0], sizes = [8, 1], strides = [1, 1]} : vector<8x128xf32> to vector<8x1xf32>
    %27 = arith.subf %25, %26 : vector<8x1xf32>
    %28 = vector.extract_strided_slice %8 {offsets = [0, 15], sizes = [8, 1], strides = [1, 1]} : vector<8x128xf32> to vector<8x1xf32>
    %29 = vector.extract_strided_slice %8 {offsets = [0, 14], sizes = [8, 1], strides = [1, 1]} : vector<8x128xf32> to vector<8x1xf32>
    %30 = arith.subf %28, %29 : vector<8x1xf32>
    %31 = vector.extract_strided_slice %10 {offsets = [0, 15], sizes = [8, 1], strides = [1, 1]} : vector<8x128xf32> to vector<8x1xf32>
    %32 = vector.extract_strided_slice %10 {offsets = [0, 14], sizes = [8, 1], strides = [1, 1]} : vector<8x128xf32> to vector<8x1xf32>
    %33 = arith.subf %31, %32 : vector<8x1xf32>
    %c0_i32_13 = arith.constant 0 : i32
    %34 = vector.broadcast %c0_i32_13 : i32 to vector<8x128xi32>
    %35 = arith.cmpi eq, %15, %34 : vector<8x128xi32>
    %c15_i32 = arith.constant 15 : i32
    %36 = vector.broadcast %c15_i32 : i32 to vector<8x128xi32>
    %37 = arith.cmpi eq, %15, %36 : vector<8x128xi32>
    %38 = vector.shape_cast %30 : vector<8x1xf32> to vector<8x1xf32>
    %39 = vector.broadcast %38 : vector<8x1xf32> to vector<8x128xf32>
    %40 = arith.select %37, %39, %18 : vector<8x128xi1>, vector<8x128xf32>
    %41 = vector.shape_cast %24 : vector<8x1xf32> to vector<8x1xf32>
    %42 = vector.broadcast %41 : vector<8x1xf32> to vector<8x128xf32>
    %43 = arith.select %35, %42, %40 : vector<8x128xi1>, vector<8x128xf32>
    %c0_i32_14 = arith.constant 0 : i32
    %44 = vector.broadcast %c0_i32_14 : i32 to vector<8x128xi32>
    %45 = arith.cmpi eq, %15, %44 : vector<8x128xi32>
    %c15_i32_15 = arith.constant 15 : i32
    %46 = vector.broadcast %c15_i32_15 : i32 to vector<8x128xi32>
    %47 = arith.cmpi eq, %15, %46 : vector<8x128xi32>
    %48 = vector.shape_cast %33 : vector<8x1xf32> to vector<8x1xf32>
    %49 = vector.broadcast %48 : vector<8x1xf32> to vector<8x128xf32>
    %50 = arith.select %47, %49, %21 : vector<8x128xi1>, vector<8x128xf32>
    %51 = vector.shape_cast %27 : vector<8x1xf32> to vector<8x1xf32>
    %52 = vector.broadcast %51 : vector<8x1xf32> to vector<8x128xf32>
    %53 = arith.select %45, %52, %50 : vector<8x128xi1>, vector<8x128xf32>
    %54 = arith.mulf %43, %43 : vector<8x128xf32>
    %55 = arith.mulf %53, %53 : vector<8x128xf32>
    %56 = arith.addf %54, %55 : vector<8x128xf32>
    %cst = arith.constant 9.99999997E-7 : f32
    %57 = vector.broadcast %cst : f32 to vector<8x128xf32>
    %58 = arith.addf %56, %57 : vector<8x128xf32>
    %59 = math.rsqrt %58 : vector<8x128xf32>
    %60 = arith.mulf %43, %59 : vector<8x128xf32>
    %61 = arith.mulf %53, %59 : vector<8x128xf32>
    %62 = arith.mulf %13, %60 : vector<8x128xf32>
    %63 = arith.mulf %14, %61 : vector<8x128xf32>
    %64 = arith.addf %62, %63 : vector<8x128xf32>
    %65 = arith.mulf %14, %60 : vector<8x128xf32>
    %66 = arith.mulf %13, %61 : vector<8x128xf32>
    %67 = arith.subf %65, %66 : vector<8x128xf32>
    %cst_16 = arith.constant 2.000000e+00 : f32
    %68 = vector.broadcast %cst_16 : f32 to vector<8x128xf32>
    %69 = arith.mulf %68, %67 : vector<8x128xf32>
    %70 = arith.mulf %69, %67 : vector<8x128xf32>
    %71 = arith.mulf %64, %64 : vector<8x128xf32>
    %72 = arith.addf %70, %71 : vector<8x128xf32>
    %73 = arith.mulf %13, %13 : vector<8x128xf32>
    %74 = arith.mulf %14, %14 : vector<8x128xf32>
    %75 = arith.addf %73, %74 : vector<8x128xf32>
    %cst_17 = arith.constant 5.000000e-01 : f32
    %76 = vector.broadcast %cst_17 : f32 to vector<8x128xf32>
    %77 = arith.mulf %76, %75 : vector<8x128xf32>
    %c0_18 = arith.constant 0 : index
    %78 = memref.load %arg3[%c0_18] : memref<3xf32, #tpu.memory_space<smem>>
    %79 = vector.shape_cast %72 : vector<8x128xf32> to vector<1x8x128xf32>
    %cst_19 = arith.constant dense<0.000000e+00> : vector<1xf32>
    %80 = vector.multi_reduction <add>, %79, %cst_19 [1, 2] : vector<1x8x128xf32> to vector<1xf32>
    %81 = vector.shape_cast %80 : vector<1xf32> to vector<1x1x1xf32>
    %82 = vector.extract %81[0, 0, 0] : f32 from vector<1x1x1xf32>
    %83 = arith.addf %78, %82 : f32
    %c0_20 = arith.constant 0 : index
    %84 = memref.load %arg3[%c0_20] : memref<3xf32, #tpu.memory_space<smem>>
    memref.store %83, %arg3[%c0_20] : memref<3xf32, #tpu.memory_space<smem>>
    %c1_21 = arith.constant 1 : index
    %85 = memref.load %arg3[%c1_21] : memref<3xf32, #tpu.memory_space<smem>>
    %86 = arith.mulf %12, %77 : vector<8x128xf32>
    %87 = vector.shape_cast %86 : vector<8x128xf32> to vector<1x8x128xf32>
    %cst_22 = arith.constant dense<0.000000e+00> : vector<1xf32>
    %88 = vector.multi_reduction <add>, %87, %cst_22 [1, 2] : vector<1x8x128xf32> to vector<1xf32>
    %89 = vector.shape_cast %88 : vector<1xf32> to vector<1x1x1xf32>
    %90 = vector.extract %89[0, 0, 0] : f32 from vector<1x1x1xf32>
    %91 = arith.addf %85, %90 : f32
    %c1_23 = arith.constant 1 : index
    %92 = memref.load %arg3[%c1_23] : memref<3xf32, #tpu.memory_space<smem>>
    memref.store %91, %arg3[%c1_23] : memref<3xf32, #tpu.memory_space<smem>>
    %c2_24 = arith.constant 2 : index
    %93 = memref.load %arg3[%c2_24] : memref<3xf32, #tpu.memory_space<smem>>
    %94 = vector.shape_cast %12 : vector<8x128xf32> to vector<1x8x128xf32>
    %cst_25 = arith.constant dense<0.000000e+00> : vector<1xf32>
    %95 = vector.multi_reduction <add>, %94, %cst_25 [1, 2] : vector<1x8x128xf32> to vector<1xf32>
    %96 = vector.shape_cast %95 : vector<1xf32> to vector<1x1x1xf32>
    %97 = vector.extract %96[0, 0, 0] : f32 from vector<1x1x1xf32>
    %98 = arith.addf %93, %97 : f32
    %c2_26 = arith.constant 2 : index
    %99 = memref.load %arg3[%c2_26] : memref<3xf32, #tpu.memory_space<smem>>
    memref.store %98, %arg3[%c2_26] : memref<3xf32, #tpu.memory_space<smem>>
    %c0_i32_27 = arith.constant 0 : i32
    %100 = arith.cmpi eq, %arg0, %c0_i32_27 : i32
    %101 = arith.extui %100 : i1 to i32
    %c0_i32_28 = arith.constant 0 : i32
    %102 = arith.cmpi ne, %101, %c0_i32_28 : i32
    scf.if %102 {
      %c0_29 = arith.constant 0 : index
      %103 = memref.load %arg3[%c0_29] : memref<3xf32, #tpu.memory_space<smem>>
      %cst_30 = arith.constant 3.125000e-02 : f32
      %104 = arith.mulf %103, %cst_30 : f32
      %c1_31 = arith.constant 1 : index
      %105 = memref.load %arg3[%c1_31] : memref<3xf32, #tpu.memory_space<smem>>
      %c2_32 = arith.constant 2 : index
      %106 = memref.load %arg3[%c2_32] : memref<3xf32, #tpu.memory_space<smem>>
      %cst_33 = arith.constant 9.99999997E-7 : f32
      %107 = arith.addf %106, %cst_33 : f32
      %108 = arith.divf %105, %107 : f32
      %cst_34 = arith.constant 1.000000e+00 : f32
      %109 = arith.mulf %cst_34, %104 : f32
      %cst_35 = arith.constant 1.000000e-01 : f32
      %110 = arith.mulf %cst_35, %108 : f32
      %111 = arith.addf %109, %110 : f32
      %c0_36 = arith.constant 0 : index
      %c0_37 = arith.constant 0 : index
      %112 = memref.load %arg2[%c0_36, %c0_37] : memref<1x1xf32, #tpu.memory_space<smem>>
      memref.store %111, %arg2[%c0_36, %c0_37] : memref<1x1xf32, #tpu.memory_space<smem>>
    } else {
    }
    return
  }
  func.func @transform_0(%arg0: i32) -> (i32, i32, i32) {
    %c0_i32 = arith.constant 0 : i32
    %c0_i32_0 = arith.constant 0 : i32
    %c0_i32_1 = arith.constant 0 : i32
    return %c0_i32, %arg0, %c0_i32_0 : i32, i32, i32
  }
  func.func @transform_1(%arg0: i32) -> (i32, i32) {
    %c0_i32 = arith.constant 0 : i32
    %c0_i32_0 = arith.constant 0 : i32
    %c0_i32_1 = arith.constant 0 : i32
    return %c0_i32, %c0_i32_0 : i32, i32
  }
}

</mosaic_0001>

<llo_original>
// kernel: tpu_custom_call.1
$region0: #{tpu_custom_call.1}
  #allocation0 [shape = 'u32[]', space=smem, size = 0x4, offset = 0x4, fixed_abs, tag = 'smem constant byte address 0x4 - core index']
  #allocation1 [shape = 'u32[144,128]{1,0:T(1,128)}', space=vmem, size = 0x12000, scoped, tag = 'internal scratch']
  #allocation2 [shape = 'f32[3]{0:T(128)}', space=smem, size = 0x200, scoped, tag = 'scratch operand']
  %s0 = inlined_call_operand.hbm [shape: f32[5,8,128], index: 0, kind: input, shape index: {}]
  %s1 = inlined_call_operand.hbm [shape: f32[1,1], index: 1, kind: output, shape index: {}]
  %s2 = sld [smem:[#allocation0]]
  $region26: #{tpu_custom_call.1} parent=0
    _
  %s4 = ssub.s32 1, %s2
  %s5 = scalar_select 0, %s4, %s2
  $region1: #{tpu_custom_call.1} parent=0
    #allocation3 [shape = 'u8[20480]{0}', space=vmem, size = 0x5000, scoped, tag = 'input window, operand 0, single buffered']
    #allocation4 [shape = 's32[1]{0}', space=sflag, size = 0x4, scoped, tag = 'scoped memory for tpu_custom_call.1']
    #allocation5 [shape = 's32[1]{0}', space=sflag, size = 0x4, scoped, tag = 'scoped memory for tpu_custom_call.1']
    #allocation6 [shape = 'u8[512]{0}', space=smem, size = 0x200, scoped, tag = 'output window, operand 0, single buffered']
    %6 = vsyncpa [#allocation4], 0
    %7 = vsyncpa [#allocation5], 0
    // Predicated region
    $region2: #{tpu_custom_call.1} parent=1 // pred_check
      _
    $region3: #{tpu_custom_call.1} parent=1 // pred_check_branch
      %9 = sbr.rel (0) target = $region5
    $region4: #{tpu_custom_call.1} parent=1 // pred_region
      %s11 = ssub.s32 640, 640
      %12 = vsyncadd [#allocation4], %s11
      %s13 = sshll.u32 [#allocation3], 4
      %s14 = int_to_ptr.vmem [resolvable:$true] %s13
      %19 = dma.hbm_to_vmem [thread:$0]  %s0, 640, %s14, [#allocation4], 128, 128, 8
    $region5: #{tpu_custom_call.1} parent=1 // pred_fallthru
      _
    // Predicated region
    $region6: #{tpu_custom_call.1} parent=1 // pred_check
      _
    $region7: #{tpu_custom_call.1} parent=1 // pred_check_branch
      %21 = sbr.rel (0) target = $region9
    $region8: #{tpu_custom_call.1} parent=1 // pred_region
      %22 = dma.done [#allocation4], 640
    $region9: #{tpu_custom_call.1} parent=1 // pred_fallthru
      _
    %p23 = scmp.eq.s32.totalorder 0, 0
    // Predicated region
    $region10: #{tpu_custom_call.1} parent=1 // pred_check
      %p24 = pneg %p23
    $region11: #{tpu_custom_call.1} parent=1 // pred_check_branch
      %26 = sbr.rel (%p24) target = $region13
    $region12: #{tpu_custom_call.1} parent=1 // pred_region
      %s27 = scalar_lea.smem [#allocation2], 0
      %28 = sst [smem:[%s27]] 0.0
      %s29 = scalar_lea.smem [#allocation2], 1
      %30 = sst [smem:[%s29]] 0.0
      %s31 = scalar_lea.smem [#allocation2], 2
      %32 = sst [smem:[%s31]] 0.0
    $region13: #{tpu_custom_call.1} parent=1 // pred_fallthru
      _
    %v33 = vld [vmem:[#allocation3] sm:$0xff]
    %s34 = scalar_lea.vmem [#allocation3], 8
    %v35 = vld [vmem:[%s34] sm:$0xff]
    %s36 = scalar_lea.vmem [#allocation3], 16
    %v37 = vld [vmem:[%s36] sm:$0xff]
    %s38 = scalar_lea.vmem [#allocation3], 24
    %v39 = vld [vmem:[%s38] sm:$0xff]
    %s40 = scalar_lea.vmem [#allocation3], 32
    %v41 = vld [vmem:[%s40] sm:$0xff]
    %v42 = vsub.f32 %v33, %v37
    %v43 = vsub.f32 %v35, %v39
    %v44 = vlaneseq
    %v45 = vand.u32 %v44, 127
    %46 = vrot.lane.b32.xlu0 %v37, 127
    %v47 = vpop.permute.xlu0 %46
    %48 = vrot.lane.b32.xlu0 %v37, 1
    %v49 = vpop.permute.xlu0 %48
    %v50 = vsub.f32 %v47, %v49
    %51 = vrot.lane.b32.xlu0 %v39, 127
    %v52 = vpop.permute.xlu0 %51
    %53 = vrot.lane.b32.xlu0 %v39, 1
    %v54 = vpop.permute.xlu0 %53
    %v55 = vsub.f32 %v52, %v54
    %57 = vrot.lane.b32.xlu0 %v37, 1
    %v58 = vpop.permute.xlu0 %57
    %v60 = vsub.f32 %v37, %v58
    %62 = vrot.lane.b32.xlu0 %v39, 1
    %v63 = vpop.permute.xlu0 %62
    %v65 = vsub.f32 %v39, %v63
    %vm66 = vcmp.eq.s32.totalorder %v45, 0
    %vm67 = vcmp.eq.s32.totalorder %v45, 15
    %69 = vset.pattern.permute.xlu0 15
    %70 = vperm.xlu0 %69, %v60
    %v71 = vpop.permute.xlu0 %70
    %v73 = vsel %vm67, %v71, %v50
    %74 = vset.pattern.permute.xlu0 1
    %75 = vperm.xlu0 %74, %v60
    %v76 = vpop.permute.xlu0 %75
    %v78 = vsel %vm66, %v76, %v73
    %80 = vset.pattern.permute.xlu0 15
    %81 = vperm.xlu0 %80, %v65
    %v82 = vpop.permute.xlu0 %81
    %v84 = vsel %vm67, %v82, %v55
    %85 = vset.pattern.permute.xlu0 1
    %86 = vperm.xlu0 %85, %v65
    %v87 = vpop.permute.xlu0 %86
    %v89 = vsel %vm66, %v87, %v84
    %v90 = vmul.f32 %v78, %v78
    %v91 = vmul.f32 %v89, %v89
    %v92 = vadd.f32 %v90, %v91
    %v93 = vadd.f32 %v92, 1e-06
    %v94 = vrsqrt.pop %v93
    %v95 = vmul.f32 %v78, %v94
    %v96 = vmul.f32 %v89, %v94
    %v97 = vmul.f32 %v42, %v95
    %v98 = vmul.f32 %v43, %v96
    %v99 = vadd.f32 %v97, %v98
    %v100 = vmul.f32 %v43, %v95
    %v101 = vmul.f32 %v42, %v96
    %v102 = vsub.f32 %v100, %v101
    %v103 = vmul.f32 %v102, 2.0
    %v104 = vmul.f32 %v103, %v102
    %v105 = vmul.f32 %v99, %v99
    %v106 = vadd.f32 %v104, %v105
    %v107 = vmul.f32 %v42, %v42
    %v108 = vmul.f32 %v43, %v43
    %v109 = vadd.f32 %v107, %v108
    %v110 = vmul.f32 %v109, 0.5
    %s111 = sld [smem:[#allocation2]]
    %112 = vadd.xlane.f32.xlu0 %v106
    %v113 = vpop.xlane.xlu0 %112
    %v114 = vrot.slane %v113, 4
    %v115 = vadd.f32 %v113, %v114
    %v116 = vrot.slane %v115, 2
    %v117 = vadd.f32 %v115, %v116
    %v118 = vrot.slane %v117, 1
    %v119 = vadd.f32 %v117, %v118
    %s120 = vtos %v119
    %s121 = sadd.f32 %s111, %s120
    %s122 = scalar_lea.smem [#allocation2], 0
    %123 = sst [smem:[%s122]] %s121
    %s124 = sld [smem:[#allocation2 + $0x1]]
    %v125 = vmul.f32 %v41, %v110
    %126 = vadd.xlane.f32.xlu0 %v125
    %v127 = vpop.xlane.xlu0 %126
    %v128 = vrot.slane %v127, 4
    %v129 = vadd.f32 %v127, %v128
    %v130 = vrot.slane %v129, 2
    %v131 = vadd.f32 %v129, %v130
    %v132 = vrot.slane %v131, 1
    %v133 = vadd.f32 %v131, %v132
    %s134 = vtos %v133
    %s135 = sadd.f32 %s124, %s134
    %s136 = scalar_lea.smem [#allocation2], 1
    %137 = sst [smem:[%s136]] %s135
    %s138 = sld [smem:[#allocation2 + $0x2]]
    %139 = vadd.xlane.f32.xlu0 %v41
    %v140 = vpop.xlane.xlu0 %139
    %v141 = vrot.slane %v140, 4
    %v142 = vadd.f32 %v140, %v141
    %v143 = vrot.slane %v142, 2
    %v144 = vadd.f32 %v142, %v143
    %v145 = vrot.slane %v144, 1
    %v146 = vadd.f32 %v144, %v145
    %s147 = vtos %v146
    %s148 = sadd.f32 %s138, %s147
    %s149 = scalar_lea.smem [#allocation2], 2
    %150 = sst [smem:[%s149]] %s148
    // Predicated region
    $region14: #{tpu_custom_call.1} parent=1 // pred_check
      %p151 = pneg %p23
    $region15: #{tpu_custom_call.1} parent=1 // pred_check_branch
      %153 = sbr.rel (%p151) target = $region17
    $region16: #{tpu_custom_call.1} parent=1 // pred_region
      %s154 = sld [smem:[#allocation2]]
      %s155 = smul.f32 %s154, 0.03125
      %s156 = sld [smem:[#allocation2 + $0x1]]
      %s157 = sld [smem:[#allocation2 + $0x2]]
      %s158 = sadd.f32 %s157, 1e-06
      %v159 = vstv %s158
      %v160 = vrcp.pop %v159
      %s161 = vtos %v160
      %s162 = smul.f32 %s156, %s161
      %s163 = smul.f32 %s162, 0.1
      %s164 = sadd.f32 %s155, %s163
      %s165 = scalar_lea.smem [#allocation6], 0
      %166 = sst [smem:[%s165]] %s164
    $region17: #{tpu_custom_call.1} parent=1 // pred_fallthru
      _
    // Predicated region
    $region18: #{tpu_custom_call.1} parent=1 // pred_check
      _
    $region19: #{tpu_custom_call.1} parent=1 // pred_check_branch
      %168 = sbr.rel (0) target = $region21
    $region20: #{tpu_custom_call.1} parent=1 // pred_region
      %s170 = ssub.s32 16, 16
      %171 = vsyncadd [#allocation5], %s170
      %174 = dma.smem_to_hbm [#allocation6], 16, %s1, [#allocation5]
    $region21: #{tpu_custom_call.1} parent=1 // pred_fallthru
      _
    // Predicated region
    $region22: #{tpu_custom_call.1} parent=1 // pred_check
      _
    $region23: #{tpu_custom_call.1} parent=1 // pred_check_branch
      %176 = sbr.rel (0) target = $region25
    $region24: #{tpu_custom_call.1} parent=1 // pred_region
      %177 = dma.done [#allocation5], 16
    $region25: #{tpu_custom_call.1} parent=1 // pred_fallthru
      _
    %178 = sfence
    %179 = vsyncpa [#allocation4], 1
    %180 = vsyncpa [#allocation5], 1

</llo_original>
